<compile_context>
chip_gen: v7x
topology: tpu7x:2x2x1
jax: 0.10.0
libtpu: 0.0.40
codegen_flags: <defaults>
</compile_context>

<pallas_src>
import functools

import jax
import jax.numpy as jnp
from jax.experimental import pallas as pl
from jax.experimental.pallas import tpu as pltpu


# ---------------------------------------------------------------------------
# Kernel: fused 3-layer MLP on one row-tile of x. Weights (bf16) resident in
# VMEM; x cast f32->bf16 in-kernel; f32 accumulate + f32 bias/ReLU epilogue.
# ---------------------------------------------------------------------------
def _mlp_kernel(x_ref, w1_ref, b1_ref, w2_ref, b2_ref, w3_ref, b3_ref, o_ref):
    x = x_ref[...].astype(jnp.bfloat16)  # VPU cast, hidden under the MXU

    h1 = jnp.dot(x, w1_ref[...], preferred_element_type=jnp.float32) + b1_ref[...]

    h2 = (
        jnp.dot(h1.astype(jnp.bfloat16), w2_ref[...],
                preferred_element_type=jnp.float32)
        + b2_ref[...]
    )
    # Dropout (eval) == identity, then ReLU (f32 epilogue).
    h2 = jnp.maximum(h2, 0.0)

    out = (
        jnp.dot(h2.astype(jnp.bfloat16), w3_ref[...],
                preferred_element_type=jnp.float32)
        + b3_ref[...]
    )
    o_ref[...] = out.astype(o_ref.dtype)


# ---------------------------------------------------------------------------
# One-time parameter preparation (outside the jitted hot path).
# ---------------------------------------------------------------------------
def prepare_projection_params(params):
    """Reshape biases to (1, N), cast weights to bf16 / biases to f32, and pad
    the output projection (W3, b3) columns to a multiple of 128 for lane-dense
    stores. Returns (prepared_params, true_output_size)."""
    as_row = lambda b: jnp.asarray(b).reshape(1, -1)

    w1, b1 = jnp.asarray(params["w1"]), as_row(params["b1"])
    w2, b2 = jnp.asarray(params["w2"]), as_row(params["b2"])
    w3, b3 = jnp.asarray(params["w3"]), as_row(params["b3"])

    d_out = w3.shape[1]
    d_out_p = pl.cdiv(d_out, 128) * 128
    if d_out_p != d_out:
        w3 = jnp.pad(w3, ((0, 0), (0, d_out_p - d_out)))
        b3 = jnp.pad(b3, ((0, 0), (0, d_out_p - d_out)))

    prepared = {
        "w1": w1.astype(jnp.bfloat16), "b1": b1.astype(jnp.float32),
        "w2": w2.astype(jnp.bfloat16), "b2": b2.astype(jnp.float32),
        "w3": w3.astype(jnp.bfloat16), "b3": b3.astype(jnp.float32),
    }
    return prepared, d_out


def _pick_row_tile(batch):
    """grid=1 single tile for small (weight-HBM-bound) batches; bigger tiles
    for large batches to amortize per-step overhead and feed the 256-wide MXU,
    while leaving grid >= 2 so v7x megacore can shard the 'parallel' axis."""
    if batch <= 128:
        return max(8, ((batch + 7) // 8) * 8)
    if batch <= 512:
        return 128
    if batch <= 2048:
        return 256
    return 512


@functools.partial(jax.jit, static_argnames=("d_out",))
def projection_forward(x, prepared_params, *, d_out):
    """x: (B, D_in) float32. prepared_params: output of prepare_projection_params."""
    w1, b1 = prepared_params["w1"], prepared_params["b1"]
    w2, b2 = prepared_params["w2"], prepared_params["b2"]
    w3, b3 = prepared_params["w3"], prepared_params["b3"]

    B, d_in = x.shape
    h0 = w1.shape[1]
    h1 = w2.shape[1]
    d_out_p = w3.shape[1]
    out_dtype = x.dtype

    tm = _pick_row_tile(B)
    # Tiny batches: pad rows up to the single tile (<= 7 extra rows).
    # Larger batches: no pad; the last grid step is a masked partial tile.
    b_rows = B
    if B < tm:
        x = jnp.pad(x, ((0, tm - B), (0, 0)))
        b_rows = tm

    grid = (pl.cdiv(b_rows, tm),)
    full = lambda shape: pl.BlockSpec(shape, lambda i: (0, 0))

    flops = 2 * b_rows * (d_in * h0 + h0 * h1 + h1 * d_out_p)
    bytes_accessed = (
        b_rows * d_in * 4                                  # x (f32)
        + (d_in * h0 + h0 * h1 + h1 * d_out_p) * 2         # bf16 weights
        + (h0 + h1 + d_out_p) * 4                          # f32 biases
        + b_rows * d_out_p * jnp.dtype(out_dtype).itemsize # output
    )

    out = pl.pallas_call(
        _mlp_kernel,
        out_shape=jax.ShapeDtypeStruct((b_rows, d_out_p), out_dtype),
        grid_spec=pltpu.PrefetchScalarGridSpec(
            num_scalar_prefetch=0,
            grid=grid,
            in_specs=[
                pl.BlockSpec((tm, d_in), lambda i: (i, 0)),   # x row tile (f32)
                full((d_in, h0)),                             # W1 (bf16, resident)
                full((1, h0)),                                # b1 (f32)
                full((h0, h1)),                               # W2 (bf16, resident)
                full((1, h1)),                                # b2 (f32)
                full((h1, d_out_p)),                          # W3 (bf16, padded cols)
                full((1, d_out_p)),                           # b3 (f32, padded cols)
            ],
            out_specs=pl.BlockSpec((tm, d_out_p), lambda i: (i, 0)),
        ),
        compiler_params=pltpu.CompilerParams(
            dimension_semantics=("parallel",),
            vmem_limit_bytes=32 * 1024 * 1024,
        ),
        cost_estimate=pl.CostEstimate(
            flops=flops, transcendentals=0, bytes_accessed=bytes_accessed),
    )(x, w1, b1, w2, b2, w3, b3)

    return out[:B, :d_out]


# ---------------------------------------------------------------------------
# Init + pure-JAX reference (same bf16-operand / f32-accumulate recipe).
# ---------------------------------------------------------------------------
def init_projection_params(key, input_size, hidden_sizes, output_size):
    """nn.Linear-style U(-1/sqrt(fan_in), 1/sqrt(fan_in)) init.
    Weights stored transposed (fan_in, fan_out); biases stored 1-D (fan_out,)."""
    dims = [input_size] + list(hidden_sizes) + [output_size]
    params = {}
    for li in range(3):
        fan_in, fan_out = dims[li], dims[li + 1]
        key, kw, kb = jax.random.split(key, 3)
        bound = 1.0 / jnp.sqrt(fan_in)
        params[f"w{li+1}"] = jax.random.uniform(
            kw, (fan_in, fan_out), jnp.float32, -bound, bound)
        params[f"b{li+1}"] = jax.random.uniform(
            kb, (fan_out,), jnp.float32, -bound, bound)
    return params


def projection_ref(x, params):
    cd = jnp.bfloat16
    b1 = jnp.asarray(params["b1"]).reshape(1, -1).astype(jnp.float32)
    b2 = jnp.asarray(params["b2"]).reshape(1, -1).astype(jnp.float32)
    b3 = jnp.asarray(params["b3"]).reshape(1, -1).astype(jnp.float32)
    h1 = jnp.dot(x.astype(cd), params["w1"].astype(cd),
                 preferred_element_type=jnp.float32) + b1
    h2 = jnp.dot(h1.astype(cd), params["w2"].astype(cd),
                 preferred_element_type=jnp.float32) + b2
    h2 = jnp.maximum(h2, 0.0)
    out = jnp.dot(h2.astype(cd), params["w3"].astype(cd),
                  preferred_element_type=jnp.float32) + b3
    return out.astype(x.dtype)


if __name__ == "__main__":
    # Scaled-down Projection(input_size=256, output_size=64, hidden_sizes=[128,128]).
    input_size, hidden_sizes, output_size = 256, [128, 128], 64

    key = jax.random.PRNGKey(0)
    key, kx1, kx2 = jax.random.split(key, 3)
    params = init_projection_params(key, input_size, hidden_sizes, output_size)
    prepared, d_out = prepare_projection_params(params)  # one-time bf16/pad

    # Small batch: weight-HBM-bound path (single tile, batch 4 padded to 8,
    # output cols padded 64 -> 128 then sliced back).
    x_small = jax.random.normal(kx1, (4, input_size), jnp.float32)
    out_small = jax.block_until_ready(
        projection_forward(x_small, prepared, d_out=d_out))
    ref_small = projection_ref(x_small, params)
    assert out_small.shape == (4, output_size), out_small.shape
    assert jnp.allclose(out_small, ref_small, atol=2e-2, rtol=2e-2), \
        "small-batch mismatch vs reference"

    # Larger batch: grid > 1 with a masked partial last tile (160 = 128 + 32).
    x_big = jax.random.normal(kx2, (160, input_size), jnp.float32)
    out_big = jax.block_until_ready(
        projection_forward(x_big, prepared, d_out=d_out))
    ref_big = projection_ref(x_big, params)
    assert out_big.shape == (160, output_size), out_big.shape
    assert jnp.allclose(out_big, ref_big, atol=2e-2, rtol=2e-2), \
        "large-batch mismatch vs reference"

    print("KERNEL_OK")
</pallas_src>

<mosaic_0001>
module attributes {stable_mosaic.version = 11 : i64} {
  func.func @_mlp_kernel(%arg0: i32, %arg1: memref<8x256xf32, #tpu.memory_space<vmem>>, %arg2: memref<256x128xbf16, #tpu.memory_space<vmem>>, %arg3: memref<1x128xf32, #tpu.memory_space<vmem>>, %arg4: memref<128x128xbf16, #tpu.memory_space<vmem>>, %arg5: memref<1x128xf32, #tpu.memory_space<vmem>>, %arg6: memref<128x128xbf16, #tpu.memory_space<vmem>>, %arg7: memref<1x128xf32, #tpu.memory_space<vmem>>, %arg8: memref<8x128xf32, #tpu.memory_space<vmem>>) attributes {dimension_semantics = [#tpu.dimension_semantics<parallel>], iteration_bounds = array<i64: 1>, scalar_prefetch = 0 : i64, scratch_operands = 0 : i64, tpu.core_type = #tpu.core_type<tc>, window_params = [{transform_indices = @transform_0, window_bounds = array<i64: 8, 256>}, {pipeline_mode = #tpu.pipeline_mode<synchronous>, transform_indices = @transform_1, window_bounds = array<i64: 256, 128>}, {pipeline_mode = #tpu.pipeline_mode<synchronous>, transform_indices = @transform_2, window_bounds = array<i64: 1, 128>}, {pipeline_mode = #tpu.pipeline_mode<synchronous>, transform_indices = @transform_3, window_bounds = array<i64: 128, 128>}, {pipeline_mode = #tpu.pipeline_mode<synchronous>, transform_indices = @transform_4, window_bounds = array<i64: 1, 128>}, {pipeline_mode = #tpu.pipeline_mode<synchronous>, transform_indices = @transform_5, window_bounds = array<i64: 128, 128>}, {pipeline_mode = #tpu.pipeline_mode<synchronous>, transform_indices = @transform_6, window_bounds = array<i64: 1, 128>}, {transform_indices = @transform_7, window_bounds = array<i64: 8, 128>}]} {
    %c0 = arith.constant 0 : index
    %c0_0 = arith.constant 0 : index
    %0 = vector.load %arg1[%c0, %c0_0] : memref<8x256xf32, #tpu.memory_space<vmem>>, vector<8x256xf32>
    %1 = arith.truncf %0 : vector<8x256xf32> to vector<8x256xbf16>
    %c0_1 = arith.constant 0 : index
    %c0_2 = arith.constant 0 : index
    %2 = vector.load %arg2[%c0_1, %c0_2] : memref<256x128xbf16, #tpu.memory_space<vmem>>, vector<256x128xbf16>
    %cst = arith.constant dense<0.000000e+00> : vector<8x128xf32>
    %3 = tpu.matmul %1, %2, %cst {dimension_numbers = #tpu.dot_dimension_numbers<[1], [0], [0], [1], [0, 0, 1, 1], [], []>} : vector<8x256xbf16>, vector<256x128xbf16>, vector<8x128xf32> -> vector<8x128xf32>
    %c0_3 = arith.constant 0 : index
    %c0_4 = arith.constant 0 : index
    %4 = vector.load %arg3[%c0_3, %c0_4] : memref<1x128xf32, #tpu.memory_space<vmem>>, vector<1x128xf32>
    %5 = vector.broadcast %4 : vector<1x128xf32> to vector<8x128xf32>
    %6 = arith.addf %3, %5 : vector<8x128xf32>
    %7 = arith.truncf %6 : vector<8x128xf32> to vector<8x128xbf16>
    %c0_5 = arith.constant 0 : index
    %c0_6 = arith.constant 0 : index
    %8 = vector.load %arg4[%c0_5, %c0_6] : memref<128x128xbf16, #tpu.memory_space<vmem>>, vector<128x128xbf16>
    %cst_7 = arith.constant dense<0.000000e+00> : vector<8x128xf32>
    %9 = tpu.matmul %7, %8, %cst_7 {dimension_numbers = #tpu.dot_dimension_numbers<[1], [0], [0], [1], [0, 0, 1, 1], [], []>} : vector<8x128xbf16>, vector<128x128xbf16>, vector<8x128xf32> -> vector<8x128xf32>
    %c0_8 = arith.constant 0 : index
    %c0_9 = arith.constant 0 : index
    %10 = vector.load %arg5[%c0_8, %c0_9] : memref<1x128xf32, #tpu.memory_space<vmem>>, vector<1x128xf32>
    %11 = vector.broadcast %10 : vector<1x128xf32> to vector<8x128xf32>
    %12 = arith.addf %9, %11 : vector<8x128xf32>
    %cst_10 = arith.constant 0.000000e+00 : f32
    %13 = vector.broadcast %cst_10 : f32 to vector<8x128xf32>
    %14 = arith.maximumf %12, %13 : vector<8x128xf32>
    %15 = arith.truncf %14 : vector<8x128xf32> to vector<8x128xbf16>
    %c0_11 = arith.constant 0 : index
    %c0_12 = arith.constant 0 : index
    %16 = vector.load %arg6[%c0_11, %c0_12] : memref<128x128xbf16, #tpu.memory_space<vmem>>, vector<128x128xbf16>
    %cst_13 = arith.constant dense<0.000000e+00> : vector<8x128xf32>
    %17 = tpu.matmul %15, %16, %cst_13 {dimension_numbers = #tpu.dot_dimension_numbers<[1], [0], [0], [1], [0, 0, 1, 1], [], []>} : vector<8x128xbf16>, vector<128x128xbf16>, vector<8x128xf32> -> vector<8x128xf32>
    %c0_14 = arith.constant 0 : index
    %c0_15 = arith.constant 0 : index
    %18 = vector.load %arg7[%c0_14, %c0_15] : memref<1x128xf32, #tpu.memory_space<vmem>>, vector<1x128xf32>
    %19 = vector.broadcast %18 : vector<1x128xf32> to vector<8x128xf32>
    %20 = arith.addf %17, %19 : vector<8x128xf32>
    %c0_16 = arith.constant 0 : index
    %c0_17 = arith.constant 0 : index
    %21 = vector.load %arg8[%c0_16, %c0_17] : memref<8x128xf32, #tpu.memory_space<vmem>>, vector<8x128xf32>
    tpu.vector_store %arg8[%c0_16, %c0_17], %20 {strides = array<i32>} : memref<8x128xf32, #tpu.memory_space<vmem>>, vector<8x128xf32>,
    return
  }
  func.func @transform_0(%arg0: i32) -> (i32, i32) {
    %c0_i32 = arith.constant 0 : i32
    %c0_i32_0 = arith.constant 0 : i32
    return %arg0, %c0_i32 : i32, i32
  }
  func.func @transform_1(%arg0: i32) -> (i32, i32) {
    %c0_i32 = arith.constant 0 : i32
    %c0_i32_0 = arith.constant 0 : i32
    %c0_i32_1 = arith.constant 0 : i32
    return %c0_i32, %c0_i32_0 : i32, i32
  }
  func.func @transform_2(%arg0: i32) -> (i32, i32) {
    %c0_i32 = arith.constant 0 : i32
    %c0_i32_0 = arith.constant 0 : i32
    %c0_i32_1 = arith.constant 0 : i32
    return %c0_i32, %c0_i32_0 : i32, i32
  }
  func.func @transform_3(%arg0: i32) -> (i32, i32) {
    %c0_i32 = arith.constant 0 : i32
    %c0_i32_0 = arith.constant 0 : i32
    %c0_i32_1 = arith.constant 0 : i32
    return %c0_i32, %c0_i32_0 : i32, i32
  }
  func.func @transform_4(%arg0: i32) -> (i32, i32) {
    %c0_i32 = arith.constant 0 : i32
    %c0_i32_0 = arith.constant 0 : i32
    %c0_i32_1 = arith.constant 0 : i32
    return %c0_i32, %c0_i32_0 : i32, i32
  }
  func.func @transform_5(%arg0: i32) -> (i32, i32) {
    %c0_i32 = arith.constant 0 : i32
    %c0_i32_0 = arith.constant 0 : i32
    %c0_i32_1 = arith.constant 0 : i32
    return %c0_i32, %c0_i32_0 : i32, i32
  }
  func.func @transform_6(%arg0: i32) -> (i32, i32) {
    %c0_i32 = arith.constant 0 : i32
    %c0_i32_0 = arith.constant 0 : i32
    %c0_i32_1 = arith.constant 0 : i32
    return %c0_i32, %c0_i32_0 : i32, i32
  }
  func.func @transform_7(%arg0: i32) -> (i32, i32) {
    %c0_i32 = arith.constant 0 : i32
    %c0_i32_0 = arith.constant 0 : i32
    return %arg0, %c0_i32 : i32, i32
  }
}

</mosaic_0001>

<llo_original>
// kernel: projection_forward.1
$region0: #{projection_forward.1}
  #allocation0 [shape = 'u32[]', space=smem, size = 0x4, offset = 0x4, fixed_abs, tag = 'smem constant byte address 0x4 - core index']
  #allocation1 [shape = 'u32[144,128]{1,0:T(1,128)}', space=vmem, size = 0x12000, scoped, tag = 'internal scratch']
  %s0 = inlined_call_operand.vmem [shape: f32[8,256], index: 0, kind: input, shape index: {}]
  %s1 = inlined_call_operand.hbm [shape: bf16[256,128], index: 1, kind: input, shape index: {}]
  %s2 = inlined_call_operand.vmem [shape: f32[1,128], index: 2, kind: input, shape index: {}]
  %s3 = inlined_call_operand.hbm [shape: bf16[128,128], index: 3, kind: input, shape index: {}]
  %s4 = inlined_call_operand.vmem [shape: f32[1,128], index: 4, kind: input, shape index: {}]
  %s5 = inlined_call_operand.hbm [shape: bf16[128,128], index: 5, kind: input, shape index: {}]
  %s6 = inlined_call_operand.vmem [shape: f32[1,128], index: 6, kind: input, shape index: {}]
  %s7 = inlined_call_operand.vmem [shape: f32[8,128], index: 7, kind: output, shape index: {}]
  %s8 = sld [smem:[#allocation0]]
  $region50: #{projection_forward.1} parent=0
    _
  %s10 = ssub.s32 1, %s8
  %s11 = scalar_select 0, %s10, %s8
  $region1: #{projection_forward.1} parent=0
    #allocation2 [shape = 'u8[65536]{0}', space=vmem, size = 0x10000, scoped, tag = 'input window, operand 1, single buffered']
    #allocation3 [shape = 's32[1]{0}', space=sflag, size = 0x4, scoped, tag = 'scoped memory for projection_forward.1']
    #allocation4 [shape = 'u8[32768]{0}', space=vmem, size = 0x8000, scoped, tag = 'input window, operand 3, single buffered']
    #allocation5 [shape = 's32[1]{0}', space=sflag, size = 0x4, scoped, tag = 'scoped memory for projection_forward.1']
    #allocation6 [shape = 'u8[32768]{0}', space=vmem, size = 0x8000, scoped, tag = 'input window, operand 5, single buffered']
    %12 = vsyncpa [#allocation3], 0
    %13 = vsyncpa [#allocation5], 0
    // Predicated region
    $region2: #{projection_forward.1} parent=1 // pred_check
      _
    $region3: #{projection_forward.1} parent=1 // pred_check_branch
      %15 = sbr.rel (0) target = $region5
    $region4: #{projection_forward.1} parent=1 // pred_region
      _
    $region5: #{projection_forward.1} parent=1 // pred_fallthru
      _
    // Predicated region
    $region6: #{projection_forward.1} parent=1 // pred_check
      _
    $region7: #{projection_forward.1} parent=1 // pred_check_branch
      %17 = sbr.rel (0) target = $region9
    $region8: #{projection_forward.1} parent=1 // pred_region
      %s19 = ssub.s32 2048, 2048
      %20 = vsyncadd [#allocation3], %s19
      %s21 = sshll.u32 [#allocation2], 4
      %s22 = int_to_ptr.vmem [resolvable:$true] %s21
      %27 = dma.hbm_to_vmem [thread:$0]  %s1, 2048, %s22, [#allocation3], 64, 64, 4
    $region9: #{projection_forward.1} parent=1 // pred_fallthru
      _
    // Predicated region
    $region10: #{projection_forward.1} parent=1 // pred_check
      _
    $region11: #{projection_forward.1} parent=1 // pred_check_branch
      %29 = sbr.rel (0) target = $region13
    $region12: #{projection_forward.1} parent=1 // pred_region
      _
    $region13: #{projection_forward.1} parent=1 // pred_fallthru
      _
    // Predicated region
    $region14: #{projection_forward.1} parent=1 // pred_check
      _
    $region15: #{projection_forward.1} parent=1 // pred_check_branch
      %31 = sbr.rel (0) target = $region17
    $region16: #{projection_forward.1} parent=1 // pred_region
      %s33 = ssub.s32 1024, 1024
      %34 = vsyncadd [#allocation5], %s33
      %s35 = sshll.u32 [#allocation4], 4
      %s36 = int_to_ptr.vmem [resolvable:$true] %s35
      %41 = dma.hbm_to_vmem [thread:$0]  %s3, 1024, %s36, [#allocation5], 64, 64, 4
    $region17: #{projection_forward.1} parent=1 // pred_fallthru
      _
    // Predicated region
    $region18: #{projection_forward.1} parent=1 // pred_check
      _
    $region19: #{projection_forward.1} parent=1 // pred_check_branch
      %43 = sbr.rel (0) target = $region21
    $region20: #{projection_forward.1} parent=1 // pred_region
      _
    $region21: #{projection_forward.1} parent=1 // pred_fallthru
      _
    // Predicated region
    $region22: #{projection_forward.1} parent=1 // pred_check
      _
    $region23: #{projection_forward.1} parent=1 // pred_check_branch
      %45 = sbr.rel (0) target = $region25
    $region24: #{projection_forward.1} parent=1 // pred_region
      %s47 = ssub.s32 1024, 1024
      %48 = vsyncadd [#allocation5], %s47
      %s49 = sshll.u32 [#allocation6], 4
      %s50 = int_to_ptr.vmem [resolvable:$true] %s49
      %55 = dma.hbm_to_vmem [thread:$0]  %s5, 1024, %s50, [#allocation5], 64, 64, 4
    $region25: #{projection_forward.1} parent=1 // pred_fallthru
      _
    // Predicated region
    $region26: #{projection_forward.1} parent=1 // pred_check
      _
    $region27: #{projection_forward.1} parent=1 // pred_check_branch
      %57 = sbr.rel (0) target = $region29
    $region28: #{projection_forward.1} parent=1 // pred_region
      _
    $region29: #{projection_forward.1} parent=1 // pred_fallthru
      _
    // Predicated region
    $region30: #{projection_forward.1} parent=1 // pred_check
      _
    $region31: #{projection_forward.1} parent=1 // pred_check_branch
      %59 = sbr.rel (0) target = $region33
    $region32: #{projection_forward.1} parent=1 // pred_region
      %60 = dma.done [#allocation3], 2048
    $region33: #{projection_forward.1} parent=1 // pred_fallthru
      _
    // Predicated region
    $region34: #{projection_forward.1} parent=1 // pred_check
      _
    $region35: #{projection_forward.1} parent=1 // pred_check_branch
      %62 = sbr.rel (0) target = $region37
    $region36: #{projection_forward.1} parent=1 // pred_region
      %63 = dma.done [#allocation5], 1024
    $region37: #{projection_forward.1} parent=1 // pred_fallthru
      _
    // Predicated region
    $region38: #{projection_forward.1} parent=1 // pred_check
      _
    $region39: #{projection_forward.1} parent=1 // pred_check_branch
      %65 = sbr.rel (0) target = $region41
    $region40: #{projection_forward.1} parent=1 // pred_region
      %66 = dma.done [#allocation5], 1024
    $region41: #{projection_forward.1} parent=1 // pred_fallthru
      _
    %v68 = vld [vmem:[%s0] sm:$0xff]
    %v69 = vld [vmem:[%s0 + $0x8] sm:$0xff]
    %v70 = vpack.c.bf16 %v68, %v68
    %v71 = vpack.c.bf16 %v69, %v69
    %v72 = vld [vmem:[#allocation2] sm:$0xf]
    %v73 = vld [vmem:[#allocation2 + $0x4] sm:$0xf]
    %v74 = vld [vmem:[#allocation2 + $0x8] sm:$0xf]
    %v75 = vld [vmem:[#allocation2 + $0xc] sm:$0xf]
    %v76 = vld [vmem:[#allocation2 + $0x10] sm:$0xf]
    %v77 = vld [vmem:[#allocation2 + $0x14] sm:$0xf]
    %v78 = vld [vmem:[#allocation2 + $0x18] sm:$0xf]
    %v79 = vld [vmem:[#allocation2 + $0x1c] sm:$0xf]
    %v80 = vld [vmem:[#allocation2 + $0x20] sm:$0xf]
    %v81 = vld [vmem:[#allocation2 + $0x24] sm:$0xf]
    %v82 = vld [vmem:[#allocation2 + $0x28] sm:$0xf]
    %v83 = vld [vmem:[#allocation2 + $0x2c] sm:$0xf]
    %v84 = vld [vmem:[#allocation2 + $0x30] sm:$0xf]
    %v85 = vld [vmem:[#allocation2 + $0x34] sm:$0xf]
    %v86 = vld [vmem:[#allocation2 + $0x38] sm:$0xf]
    %v87 = vld [vmem:[#allocation2 + $0x3c] sm:$0xf]
    %v88 = vld [vmem:[#allocation2 + $0x40] sm:$0xf]
    %v89 = vld [vmem:[#allocation2 + $0x44] sm:$0xf]
    %v90 = vld [vmem:[#allocation2 + $0x48] sm:$0xf]
    %v91 = vld [vmem:[#allocation2 + $0x4c] sm:$0xf]
    %v92 = vld [vmem:[#allocation2 + $0x50] sm:$0xf]
    %v93 = vld [vmem:[#allocation2 + $0x54] sm:$0xf]
    %v94 = vld [vmem:[#allocation2 + $0x58] sm:$0xf]
    %v95 = vld [vmem:[#allocation2 + $0x5c] sm:$0xf]
    %v96 = vld [vmem:[#allocation2 + $0x60] sm:$0xf]
    %v97 = vld [vmem:[#allocation2 + $0x64] sm:$0xf]
    %v98 = vld [vmem:[#allocation2 + $0x68] sm:$0xf]
    %v99 = vld [vmem:[#allocation2 + $0x6c] sm:$0xf]
    %v100 = vld [vmem:[#allocation2 + $0x70] sm:$0xf]
    %v101 = vld [vmem:[#allocation2 + $0x74] sm:$0xf]
    %v102 = vld [vmem:[#allocation2 + $0x78] sm:$0xf]
    %v103 = vld [vmem:[#allocation2 + $0x7c] sm:$0xf]
    %v104 = vld [vmem:[%s2] sm:$0x1]
    %v106 = vlaneseq
    %v107 = vshrl.u32 %v106, 7
    %v108 = vsub.s32 0, %v107
    %v109 = vrot.slane %v104, %v108
    %v143 = vunpack.c.l.b16 %v72
    %v144 = vunpack.c.l.b16 %v73
    %v145 = vunpack.c.l.b16 %v74
    %v146 = vunpack.c.l.b16 %v75
    %v147 = vunpack.c.l.b16 %v76
    %v148 = vunpack.c.l.b16 %v77
    %v149 = vunpack.c.l.b16 %v78
    %v150 = vunpack.c.l.b16 %v79
    %v151 = vunpack.c.l.b16 %v80
    %v152 = vunpack.c.l.b16 %v81
    %v153 = vunpack.c.l.b16 %v82
    %v154 = vunpack.c.l.b16 %v83
    %v155 = vunpack.c.l.b16 %v84
    %v156 = vunpack.c.l.b16 %v85
    %v157 = vunpack.c.l.b16 %v86
    %v158 = vunpack.c.l.b16 %v87
    %v159 = vunpack.c.l.b16 %v88
    %v160 = vunpack.c.l.b16 %v89
    %v161 = vunpack.c.l.b16 %v90
    %v162 = vunpack.c.l.b16 %v91
    %v163 = vunpack.c.l.b16 %v92
    %v164 = vunpack.c.l.b16 %v93
    %v165 = vunpack.c.l.b16 %v94
    %v166 = vunpack.c.l.b16 %v95
    %v167 = vunpack.c.l.b16 %v96
    %v168 = vunpack.c.l.b16 %v97
    %v169 = vunpack.c.l.b16 %v98
    %v170 = vunpack.c.l.b16 %v99
    %v171 = vunpack.c.l.b16 %v100
    %v172 = vunpack.c.l.b16 %v101
    %v173 = vunpack.c.l.b16 %v102
    %v174 = vunpack.c.l.b16 %v103
    %v175 = vpack.c.b16 %v144, %v143
    %v176 = vpack.c.b16 %v146, %v145
    %v177 = vpack.c.b16 %v148, %v147
    %v178 = vpack.c.b16 %v150, %v149
    %v179 = vpack.c.b16 %v152, %v151
    %v180 = vpack.c.b16 %v154, %v153
    %v181 = vpack.c.b16 %v156, %v155
    %v182 = vpack.c.b16 %v158, %v157
    %v183 = vpack.c.b16 %v160, %v159
    %v184 = vpack.c.b16 %v162, %v161
    %v185 = vpack.c.b16 %v164, %v163
    %v186 = vpack.c.b16 %v166, %v165
    %v187 = vpack.c.b16 %v168, %v167
    %v188 = vpack.c.b16 %v170, %v169
    %v189 = vpack.c.b16 %v172, %v171
    %v190 = vpack.c.b16 %v174, %v173
    %207 = vmatprep.subr.bf16.mxu0 0
    %208 = vmatpush1.bf16.msra.mxu0 %v175
    %209 = vmatprep.subr.bf16.mxu0 0
    %210 = vmatpush1.bf16.msra.mxu0 %v176
    %211 = vmatprep.subr.bf16.mxu0 0
    %212 = vmatpush1.bf16.msra.mxu0 %v177
    %213 = vmatprep.subr.bf16.mxu0 0
    %214 = vmatpush1.bf16.msra.mxu0 %v178
    %215 = vmatprep.subr.bf16.mxu0 0
    %216 = vmatpush1.bf16.msra.mxu0 %v179
    %217 = vmatprep.subr.bf16.mxu0 0
    %218 = vmatpush1.bf16.msra.mxu0 %v180
    %219 = vmatprep.subr.bf16.mxu0 0
    %220 = vmatpush1.bf16.msra.mxu0 %v181
    %221 = vmatprep.subr.bf16.mxu0 0
    %222 = vmatpush1.bf16.msra.mxu0 %v182
    %223 = vmatprep.subr.bf16.mxu0 0
    %224 = vmatpush1.bf16.msra.mxu0 %v183
    %225 = vmatprep.subr.bf16.mxu0 0
    %226 = vmatpush1.bf16.msra.mxu0 %v184
    %227 = vmatprep.subr.bf16.mxu0 0
    %228 = vmatpush1.bf16.msra.mxu0 %v185
    %229 = vmatprep.subr.bf16.mxu0 0
    %230 = vmatpush1.bf16.msra.mxu0 %v186
    %231 = vmatprep.subr.bf16.mxu0 0
    %232 = vmatpush1.bf16.msra.mxu0 %v187
    %233 = vmatprep.subr.bf16.mxu0 0
    %234 = vmatpush1.bf16.msra.mxu0 %v188
    %235 = vmatprep.subr.bf16.mxu0 0
    %236 = vmatpush1.bf16.msra.mxu0 %v189
    %237 = vmatprep.subr.bf16.mxu0 0
    %238 = vmatpush1.bf16.msra.mxu0 %v190
    %239 = vmatprep.mubr.bf16.mxu0 %v71
    %240 = vmatmul.mubr.bf16.gmra.mrb[0].mxu0 %v70
    %v241 = vpop.f32.mrb[0].mxu0
    %v242 = vadd.f32 %v109, %v241
    %v243 = vpop.f32.mrb[0].mxu0
    %v244 = vpop.f32.mrb[0].mxu0
    %v245 = vpop.f32.mrb[0].mxu0
    %246 = vdwg.mxu0
    %v247 = vpack.c.bf16 %v242, %v242
    %v248 = vld [vmem:[#allocation4] sm:$0xf]
    %v249 = vld [vmem:[#allocation4 + $0x4] sm:$0xf]
    %v250 = vld [vmem:[#allocation4 + $0x8] sm:$0xf]
    %v251 = vld [vmem:[#allocation4 + $0xc] sm:$0xf]
    %v252 = vld [vmem:[#allocation4 + $0x10] sm:$0xf]
    %v253 = vld [vmem:[#allocation4 + $0x14] sm:$0xf]
    %v254 = vld [vmem:[#allocation4 + $0x18] sm:$0xf]
    %v255 = vld [vmem:[#allocation4 + $0x1c] sm:$0xf]
    %v256 = vld [vmem:[#allocation4 + $0x20] sm:$0xf]
    %v257 = vld [vmem:[#allocation4 + $0x24] sm:$0xf]
    %v258 = vld [vmem:[#allocation4 + $0x28] sm:$0xf]
    %v259 = vld [vmem:[#allocation4 + $0x2c] sm:$0xf]
    %v260 = vld [vmem:[#allocation4 + $0x30] sm:$0xf]
    %v261 = vld [vmem:[#allocation4 + $0x34] sm:$0xf]
    %v262 = vld [vmem:[#allocation4 + $0x38] sm:$0xf]
    %v263 = vld [vmem:[#allocation4 + $0x3c] sm:$0xf]
    %v264 = vld [vmem:[%s4] sm:$0x1]
    %v266 = vlaneseq
    %v267 = vshrl.u32 %v266, 7
    %v268 = vsub.s32 0, %v267
    %v269 = vrot.slane %v264, %v268
    %v287 = vunpack.c.l.b16 %v248
    %v288 = vunpack.c.l.b16 %v249
    %v289 = vunpack.c.l.b16 %v250
    %v290 = vunpack.c.l.b16 %v251
    %v291 = vunpack.c.l.b16 %v252
    %v292 = vunpack.c.l.b16 %v253
    %v293 = vunpack.c.l.b16 %v254
    %v294 = vunpack.c.l.b16 %v255
    %v295 = vunpack.c.l.b16 %v256
    %v296 = vunpack.c.l.b16 %v257
    %v297 = vunpack.c.l.b16 %v258
    %v298 = vunpack.c.l.b16 %v259
    %v299 = vunpack.c.l.b16 %v260
    %v300 = vunpack.c.l.b16 %v261
    %v301 = vunpack.c.l.b16 %v262
    %v302 = vunpack.c.l.b16 %v263
    %v303 = vpack.c.b16 %v288, %v287
    %v304 = vpack.c.b16 %v290, %v289
    %v305 = vpack.c.b16 %v292, %v291
    %v306 = vpack.c.b16 %v294, %v293
    %v307 = vpack.c.b16 %v296, %v295
    %v308 = vpack.c.b16 %v298, %v297
    %v309 = vpack.c.b16 %v300, %v299
    %v310 = vpack.c.b16 %v302, %v301
    %319 = vmatprep.subr.bf16.mxu0 0
    %320 = vmatpush1.bf16.msra.mxu0 %v303
    %321 = vmatprep.subr.bf16.mxu0 0
    %322 = vmatpush1.bf16.msra.mxu0 %v304
    %323 = vmatprep.subr.bf16.mxu0 0
    %324 = vmatpush1.bf16.msra.mxu0 %v305
    %325 = vmatprep.subr.bf16.mxu0 0
    %326 = vmatpush1.bf16.msra.mxu0 %v306
    %327 = vmatprep.subr.bf16.mxu0 0
    %328 = vmatpush1.bf16.msra.mxu0 %v307
    %329 = vmatprep.subr.bf16.mxu0 0
    %330 = vmatpush1.bf16.msra.mxu0 %v308
    %331 = vmatprep.subr.bf16.mxu0 0
    %332 = vmatpush1.bf16.msra.mxu0 %v309
    %333 = vmatprep.subr.bf16.mxu0 0
    %334 = vmatpush1.bf16.msra.mxu0 %v310
    %335 = vmatprep.subr.bf16.mxu0 0
    %336 = vmatpush1.bf16.msra.mxu0 0
    %337 = vmatprep.subr.bf16.mxu0 0
    %338 = vmatpush1.bf16.msra.mxu0 0
    %339 = vmatprep.subr.bf16.mxu0 0
    %340 = vmatpush1.bf16.msra.mxu0 0
    %341 = vmatprep.subr.bf16.mxu0 0
    %342 = vmatpush1.bf16.msra.mxu0 0
    %343 = vmatprep.subr.bf16.mxu0 0
    %344 = vmatpush1.bf16.msra.mxu0 0
    %345 = vmatprep.subr.bf16.mxu0 0
    %346 = vmatpush1.bf16.msra.mxu0 0
    %347 = vmatprep.subr.bf16.mxu0 0
    %348 = vmatpush1.bf16.msra.mxu0 0
    %349 = vmatprep.subr.bf16.mxu0 0
    %350 = vmatpush1.bf16.msra.mxu0 0
    %351 = vmatprep.mubr.bf16.mxu0 0
    %352 = vmatmul.mubr.bf16.gmra.mrb[0].mxu0 %v247
    %v353 = vpop.f32.mrb[0].mxu0
    %v354 = vadd.f32 %v269, %v353
    %v355 = vpop.f32.mrb[0].mxu0
    %v356 = vpop.f32.mrb[0].mxu0
    %v357 = vpop.f32.mrb[0].mxu0
    %358 = vdwg.mxu0
    %v359 = vmax.f32 %v354, 0.0
    %v360 = vpack.c.bf16 %v359, %v359
    %v361 = vld [vmem:[#allocation6] sm:$0xf]
    %v362 = vld [vmem:[#allocation6 + $0x4] sm:$0xf]
    %v363 = vld [vmem:[#allocation6 + $0x8] sm:$0xf]
    %v364 = vld [vmem:[#allocation6 + $0xc] sm:$0xf]
    %v365 = vld [vmem:[#allocation6 + $0x10] sm:$0xf]
    %v366 = vld [vmem:[#allocation6 + $0x14] sm:$0xf]
    %v367 = vld [vmem:[#allocation6 + $0x18] sm:$0xf]
    %v368 = vld [vmem:[#allocation6 + $0x1c] sm:$0xf]
    %v369 = vld [vmem:[#allocation6 + $0x20] sm:$0xf]
    %v370 = vld [vmem:[#allocation6 + $0x24] sm:$0xf]
    %v371 = vld [vmem:[#allocation6 + $0x28] sm:$0xf]
    %v372 = vld [vmem:[#allocation6 + $0x2c] sm:$0xf]
    %v373 = vld [vmem:[#allocation6 + $0x30] sm:$0xf]
    %v374 = vld [vmem:[#allocation6 + $0x34] sm:$0xf]
    %v375 = vld [vmem:[#allocation6 + $0x38] sm:$0xf]
    %v376 = vld [vmem:[#allocation6 + $0x3c] sm:$0xf]
    %v377 = vld [vmem:[%s6] sm:$0x1]
    %v379 = vlaneseq
    %v380 = vshrl.u32 %v379, 7
    %v381 = vsub.s32 0, %v380
    %v382 = vrot.slane %v377, %v381
    %v400 = vunpack.c.l.b16 %v361
    %v401 = vunpack.c.l.b16 %v362
    %v402 = vunpack.c.l.b16 %v363
    %v403 = vunpack.c.l.b16 %v364
    %v404 = vunpack.c.l.b16 %v365
    %v405 = vunpack.c.l.b16 %v366
    %v406 = vunpack.c.l.b16 %v367
    %v407 = vunpack.c.l.b16 %v368
    %v408 = vunpack.c.l.b16 %v369
    %v409 = vunpack.c.l.b16 %v370
    %v410 = vunpack.c.l.b16 %v371
    %v411 = vunpack.c.l.b16 %v372
    %v412 = vunpack.c.l.b16 %v373
    %v413 = vunpack.c.l.b16 %v374
    %v414 = vunpack.c.l.b16 %v375
    %v415 = vunpack.c.l.b16 %v376
    %v416 = vpack.c.b16 %v401, %v400
    %v417 = vpack.c.b16 %v403, %v402
    %v418 = vpack.c.b16 %v405, %v404
    %v419 = vpack.c.b16 %v407, %v406
    %v420 = vpack.c.b16 %v409, %v408
    %v421 = vpack.c.b16 %v411, %v410
    %v422 = vpack.c.b16 %v413, %v412
    %v423 = vpack.c.b16 %v415, %v414
    %432 = vmatprep.subr.bf16.mxu0 0
    %433 = vmatpush1.bf16.msra.mxu0 %v416
    %434 = vmatprep.subr.bf16.mxu0 0
    %435 = vmatpush1.bf16.msra.mxu0 %v417
    %436 = vmatprep.subr.bf16.mxu0 0
    %437 = vmatpush1.bf16.msra.mxu0 %v418
    %438 = vmatprep.subr.bf16.mxu0 0
    %439 = vmatpush1.bf16.msra.mxu0 %v419
    %440 = vmatprep.subr.bf16.mxu0 0
    %441 = vmatpush1.bf16.msra.mxu0 %v420
    %442 = vmatprep.subr.bf16.mxu0 0
    %443 = vmatpush1.bf16.msra.mxu0 %v421
    %444 = vmatprep.subr.bf16.mxu0 0
    %445 = vmatpush1.bf16.msra.mxu0 %v422
    %446 = vmatprep.subr.bf16.mxu0 0
    %447 = vmatpush1.bf16.msra.mxu0 %v423
    %448 = vmatprep.subr.bf16.mxu0 0
    %449 = vmatpush1.bf16.msra.mxu0 0
    %450 = vmatprep.subr.bf16.mxu0 0
    %451 = vmatpush1.bf16.msra.mxu0 0
    %452 = vmatprep.subr.bf16.mxu0 0
    %453 = vmatpush1.bf16.msra.mxu0 0
    %454 = vmatprep.subr.bf16.mxu0 0
    %455 = vmatpush1.bf16.msra.mxu0 0
    %456 = vmatprep.subr.bf16.mxu0 0
    %457 = vmatpush1.bf16.msra.mxu0 0
    %458 = vmatprep.subr.bf16.mxu0 0
    %459 = vmatpush1.bf16.msra.mxu0 0
    %460 = vmatprep.subr.bf16.mxu0 0
    %461 = vmatpush1.bf16.msra.mxu0 0
    %462 = vmatprep.subr.bf16.mxu0 0
    %463 = vmatpush1.bf16.msra.mxu0 0
    %464 = vmatprep.mubr.bf16.mxu0 0
    %465 = vmatmul.mubr.bf16.gmra.mrb[0].mxu0 %v360
    %v466 = vpop.f32.mrb[0].mxu0
    %v467 = vadd.f32 %v382, %v466
    %v468 = vpop.f32.mrb[0].mxu0
    %v469 = vpop.f32.mrb[0].mxu0
    %v470 = vpop.f32.mrb[0].mxu0
    %471 = vdwg.mxu0
    %472 = vst [vmem:[%s7] sm:$0xff] %v467
    // Predicated region
    $region42: #{projection_forward.1} parent=1 // pred_check
      _
    $region43: #{projection_forward.1} parent=1 // pred_check_branch
      %474 = sbr.rel (0) target = $region45
    $region44: #{projection_forward.1} parent=1 // pred_region
      _
    $region45: #{projection_forward.1} parent=1 // pred_fallthru
      _
    // Predicated region
    $region46: #{projection_forward.1} parent=1 // pred_check
      _
    $region47: #{projection_forward.1} parent=1 // pred_check_branch
      %476 = sbr.rel (0) target = $region49
    $region48: #{projection_forward.1} parent=1 // pred_region
      _
    $region49: #{projection_forward.1} parent=1 // pred_fallthru
      _
    %477 = vsyncpa [#allocation3], 1
    %478 = vsyncpa [#allocation5], 1

</llo_original>
